<compile_context>
chip_gen: v6e
topology: v6e:2x2x1
jax: 0.10.0
libtpu: 0.0.40
codegen_flags: <defaults>
</compile_context>

<pallas_src>
import math

import jax
import jax.numpy as jnp
from jax.experimental import pallas as pl
from jax.experimental.pallas import tpu as pltpu

_HIDDEN = 50
_HIDDEN_PAD = 64          # pad 50 -> 64 (sublane aligned); extra rows/cols are zeros
_MIN_BLOCK_M = 512
_MAX_BLOCK_M = 8192
_TARGET_X_TILE_BYTES = 4 << 20   # ~4 MiB of bf16 x per pipeline buffer


def _round_up(n, m):
    return ((n + m - 1) // m) * m


def _discriminator_kernel(x_ref, w1_ref, b1_ref, wf_ref, bf_ref, out_ref):
    # Linear(E, 64[=padded 50]) + LeakyReLU(0.2).  x/W1 are bf16; f32 accumulate.
    h = jnp.dot(x_ref[...], w1_ref[...], preferred_element_type=jnp.float32)
    h = h + b1_ref[...]
    h = jnp.where(h >= 0.0, h, 0.2 * h)
    # Folded linear chain: Linear(50,32) + both heads -> one [64, 2] matmul
    # (col 0 = validity, col 1 = label).
    z = jnp.dot(h, wf_ref[...], preferred_element_type=jnp.float32) + bf_ref[...]
    # Numerically-stable sigmoid: exp argument always <= 0 (no overflow).
    pos = z >= 0.0
    ez = jnp.exp(jnp.where(pos, -z, z))
    out_ref[...] = jnp.where(pos, 1.0 / (1.0 + ez), ez / (1.0 + ez))


def init_params(key, node_embed_size):
    """Deterministic PyTorch-style (uniform +-1/sqrt(fan_in)) init.

    Weights are stored as [in, out]; biases as [1, out].
    """
    layer_dims = {
        "w1": (node_embed_size, 50), "w2": (50, 32),          # disMLP
        "aw1": (32, 16), "aw2": (16, 8), "aw3": (8, 1),       # adv_layer
        "uw1": (32, 16), "uw2": (16, 8), "uw3": (8, 1),       # aux_layer
    }
    params = {}
    keys = jax.random.split(key, 2 * len(layer_dims))
    for i, (name, (fan_in, fan_out)) in enumerate(layer_dims.items()):
        bound = 1.0 / math.sqrt(fan_in)
        w = jax.random.uniform(
            keys[2 * i], (fan_in, fan_out), jnp.float32, -bound, bound)
        b = jax.random.uniform(
            keys[2 * i + 1], (1, fan_out), jnp.float32, -bound, bound)
        params[name] = w
        params[name.replace("w", "b", 1)] = b
    return params


def prepare_kernel_params(params):
    """One-time fold + pad + dtype cast of the Discriminator weights.

    Call this once whenever `params` change and pass the result to
    discriminator_forward; it must NOT be re-run per forward call.
    """
    def head_fold(prefix):
        w = (params["w2"] @ params[prefix + "w1"]
             @ params[prefix + "w2"] @ params[prefix + "w3"])            # [50, 1]
        b = (((params["b2"] @ params[prefix + "w1"] + params[prefix + "b1"])
              @ params[prefix + "w2"] + params[prefix + "b2"])
             @ params[prefix + "w3"] + params[prefix + "b3"])            # [1, 1]
        return w, b

    wa, ba = head_fold("a")   # adv_layer  -> validity
    wu, bu = head_fold("u")   # aux_layer  -> label
    w_fold = jnp.concatenate([wa, wu], axis=1)   # [50, 2]
    b_fold = jnp.concatenate([ba, bu], axis=1)   # [1, 2]

    pad = _HIDDEN_PAD - _HIDDEN
    return {
        # bf16 halves the HBM read of the large operands; biases / folded tail
        # stay f32 so all post-MXU math is full precision.
        "w1": jnp.pad(params["w1"], ((0, 0), (0, pad))).astype(jnp.bfloat16),
        "b1": jnp.pad(params["b1"], ((0, 0), (0, pad))).astype(jnp.float32),
        "wf": jnp.pad(w_fold, ((0, pad), (0, 0))).astype(jnp.float32),
        "bf": b_fold.astype(jnp.float32),
    }


def _choose_block_m(batch, embed):
    """Tile the batch so each bf16 x buffer is MiB-scale, capped for VMEM,
    while keeping >=2 grid steps on large batches (v7x megacore sharding)."""
    block_m = _TARGET_X_TILE_BYTES // (2 * embed)          # bf16 bytes per row = 2*embed
    block_m = max(_MIN_BLOCK_M, min(_MAX_BLOCK_M, block_m))
    block_m = _round_up(block_m, 8)
    if batch <= _MIN_BLOCK_M:
        return batch                                        # single full-dim block
    if batch <= block_m:
        # Fits one target tile but is "large": split in two so the parallel
        # grid axis can shard across v7x's two TensorCores.
        return _round_up(pl.cdiv(batch, 2), 8)
    return block_m


def _vmem_limit_bytes(block_m, embed):
    x_buf = block_m * embed * 2                              # bf16 tile
    w1_buf = embed * _HIDDEN_PAD * 2
    small = _HIDDEN_PAD * 4 + _HIDDEN_PAD * 2 * 4 + 2 * 4    # b1, wf, bf
    out_buf = block_m * 2 * 4
    temps = 2 * block_m * _HIDDEN_PAD * 4                    # h + elementwise temps
    est = 2 * (x_buf + w1_buf + small + out_buf) + temps     # x2 for double buffering
    return int(min(max(2 * est, 8 << 20), 48 << 20))         # fits v7x 64 MiB physical


def discriminator_forward(data, kparams):
    """Equivalent to Discriminator.forward: returns (validity, label).

    `kparams` must come from prepare_kernel_params(params) (hoisted fold)."""
    batch = data.shape[0]
    if batch == 0:
        empty = jnp.zeros((0, 1), jnp.float32)
        return empty, empty

    x = data.reshape(batch, -1).astype(jnp.bfloat16)   # data.view(data.size(0), -1)
    embed = x.shape[1]

    block_m = _choose_block_m(batch, embed)
    grid = (pl.cdiv(batch, block_m),)                  # partial last block, no x pad

    out = pl.pallas_call(
        _discriminator_kernel,
        out_shape=jax.ShapeDtypeStruct((batch, 2), jnp.float32),
        grid=grid,
        in_specs=[
            pl.BlockSpec((block_m, embed), lambda i: (i, 0)),        # x tile (bf16)
            pl.BlockSpec((embed, _HIDDEN_PAD), lambda i: (0, 0)),    # W1 (padded, bf16)
            pl.BlockSpec((1, _HIDDEN_PAD), lambda i: (0, 0)),        # b1 (padded)
            pl.BlockSpec((_HIDDEN_PAD, 2), lambda i: (0, 0)),        # W_fold
            pl.BlockSpec((1, 2), lambda i: (0, 0)),                  # b_fold
        ],
        out_specs=pl.BlockSpec((block_m, 2), lambda i: (i, 0)),
        compiler_params=pltpu.CompilerParams(
            dimension_semantics=("parallel",),
            vmem_limit_bytes=_vmem_limit_bytes(block_m, embed)),
    )(x, kparams["w1"], kparams["b1"], kparams["wf"], kparams["bf"])

    validity = out[:, 0:1]
    label = out[:, 1:2]
    return validity, label


def _reference_forward(data, params):
    """Plain-JAX f32 reference (un-folded chain) for correctness checking."""
    x = data.reshape(data.shape[0], -1).astype(jnp.float32)
    h = x @ params["w1"] + params["b1"]
    h = jnp.where(h >= 0.0, h, 0.2 * h)
    out = h @ params["w2"] + params["b2"]

    def head(p):
        a = out @ params[p + "w1"] + params[p + "b1"]
        a = a @ params[p + "w2"] + params[p + "b2"]
        a = a @ params[p + "w3"] + params[p + "b3"]
        return jax.nn.sigmoid(a)

    return head("a"), head("u")


if __name__ == "__main__":
    node_embed_size = 32
    batch = 8

    key = jax.random.PRNGKey(0)
    key_data, key_params = jax.random.split(key)

    # `data` flattens to (batch, node_embed_size); use it directly at that shape.
    data = jax.random.normal(key_data, (batch, node_embed_size), jnp.float32)
    params = init_params(key_params, node_embed_size)

    # One-time fold/pad/cast of weights (hoisted out of the per-call path).
    kernel_params = prepare_kernel_params(params)

    forward = jax.jit(discriminator_forward)
    validity, label = forward(data, kernel_params)
    jax.block_until_ready((validity, label))

    ref_validity, ref_label = _reference_forward(data, params)
    assert validity.shape == (batch, 1) and label.shape == (batch, 1)
    # Tolerance loosened vs. pure-f32 because x / W1 are fed to the MXU as bf16
    # (post-sigmoid error from that quantization is ~1e-4).
    assert jnp.allclose(validity, ref_validity, atol=5e-3, rtol=1e-3)
    assert jnp.allclose(label, ref_label, atol=5e-3, rtol=1e-3)

    print("KERNEL_OK")
</pallas_src>

<mosaic_0001>
module attributes {stable_mosaic.version = 11 : i64} {
  func.func @_discriminator_kernel(%arg0: i32, %arg1: memref<8x32xbf16, #tpu.memory_space<vmem>>, %arg2: memref<32x64xbf16, #tpu.memory_space<vmem>>, %arg3: memref<1x64xf32, #tpu.memory_space<vmem>>, %arg4: memref<64x2xf32, #tpu.memory_space<vmem>>, %arg5: memref<1x2xf32, #tpu.memory_space<vmem>>, %arg6: memref<8x2xf32, #tpu.memory_space<vmem>>) attributes {dimension_semantics = [#tpu.dimension_semantics<parallel>], iteration_bounds = array<i64: 1>, scalar_prefetch = 0 : i64, scratch_operands = 0 : i64, tpu.core_type = #tpu.core_type<tc>, window_params = [{transform_indices = @transform_0, window_bounds = array<i64: 8, 32>}, {pipeline_mode = #tpu.pipeline_mode<synchronous>, transform_indices = @transform_1, window_bounds = array<i64: 32, 64>}, {pipeline_mode = #tpu.pipeline_mode<synchronous>, transform_indices = @transform_2, window_bounds = array<i64: 1, 64>}, {pipeline_mode = #tpu.pipeline_mode<synchronous>, transform_indices = @transform_3, window_bounds = array<i64: 64, 2>}, {pipeline_mode = #tpu.pipeline_mode<synchronous>, transform_indices = @transform_4, window_bounds = array<i64: 1, 2>}, {transform_indices = @transform_5, window_bounds = array<i64: 8, 2>}]} {
    %c0 = arith.constant 0 : index
    %c0_0 = arith.constant 0 : index
    %0 = vector.load %arg1[%c0, %c0_0] : memref<8x32xbf16, #tpu.memory_space<vmem>>, vector<8x32xbf16>
    %c0_1 = arith.constant 0 : index
    %c0_2 = arith.constant 0 : index
    %1 = vector.load %arg2[%c0_1, %c0_2] : memref<32x64xbf16, #tpu.memory_space<vmem>>, vector<32x64xbf16>
    %cst = arith.constant dense<0.000000e+00> : vector<8x64xf32>
    %2 = tpu.matmul %0, %1, %cst {dimension_numbers = #tpu.dot_dimension_numbers<[1], [0], [0], [1], [0, 0, 1, 1], [], []>} : vector<8x32xbf16>, vector<32x64xbf16>, vector<8x64xf32> -> vector<8x64xf32>
    %c0_3 = arith.constant 0 : index
    %c0_4 = arith.constant 0 : index
    %3 = vector.load %arg3[%c0_3, %c0_4] : memref<1x64xf32, #tpu.memory_space<vmem>>, vector<1x64xf32>
    %4 = vector.broadcast %3 : vector<1x64xf32> to vector<8x64xf32>
    %5 = arith.addf %2, %4 : vector<8x64xf32>
    %cst_5 = arith.constant 0.000000e+00 : f32
    %6 = vector.broadcast %cst_5 : f32 to vector<8x64xf32>
    %7 = arith.cmpf oge, %5, %6 : vector<8x64xf32>
    %cst_6 = arith.constant 2.000000e-01 : f32
    %8 = vector.broadcast %cst_6 : f32 to vector<8x64xf32>
    %9 = arith.mulf %8, %5 : vector<8x64xf32>
    %10 = arith.select %7, %5, %9 : vector<8x64xi1>, vector<8x64xf32>
    %c0_7 = arith.constant 0 : index
    %c0_8 = arith.constant 0 : index
    %11 = vector.load %arg4[%c0_7, %c0_8] : memref<64x2xf32, #tpu.memory_space<vmem>>, vector<64x2xf32>
    %cst_9 = arith.constant dense<0.000000e+00> : vector<8x2xf32>
    %12 = tpu.matmul %10, %11, %cst_9 {dimension_numbers = #tpu.dot_dimension_numbers<[1], [0], [0], [1], [0, 0, 1, 1], [], []>} : vector<8x64xf32>, vector<64x2xf32>, vector<8x2xf32> -> vector<8x2xf32>
    %c0_10 = arith.constant 0 : index
    %c0_11 = arith.constant 0 : index
    %13 = vector.load %arg5[%c0_10, %c0_11] : memref<1x2xf32, #tpu.memory_space<vmem>>, vector<1x2xf32>
    %14 = vector.broadcast %13 : vector<1x2xf32> to vector<8x2xf32>
    %15 = arith.addf %12, %14 : vector<8x2xf32>
    %cst_12 = arith.constant 0.000000e+00 : f32
    %16 = vector.broadcast %cst_12 : f32 to vector<8x2xf32>
    %17 = arith.cmpf oge, %15, %16 : vector<8x2xf32>
    %cst_13 = arith.constant 0.000000e+00 : f32
    %18 = vector.broadcast %cst_13 : f32 to vector<8x2xf32>
    %19 = arith.subf %18, %15 : vector<8x2xf32>
    %20 = arith.select %17, %19, %15 : vector<8x2xi1>, vector<8x2xf32>
    %21 = math.exp %20 : vector<8x2xf32>
    %cst_14 = arith.constant 1.000000e+00 : f32
    %22 = vector.broadcast %cst_14 : f32 to vector<8x2xf32>
    %23 = arith.addf %22, %21 : vector<8x2xf32>
    %cst_15 = arith.constant 1.000000e+00 : f32
    %24 = vector.broadcast %cst_15 : f32 to vector<8x2xf32>
    %25 = arith.divf %24, %23 : vector<8x2xf32>
    %cst_16 = arith.constant 1.000000e+00 : f32
    %26 = vector.broadcast %cst_16 : f32 to vector<8x2xf32>
    %27 = arith.addf %26, %21 : vector<8x2xf32>
    %28 = arith.divf %21, %27 : vector<8x2xf32>
    %29 = arith.select %17, %25, %28 : vector<8x2xi1>, vector<8x2xf32>
    %c0_17 = arith.constant 0 : index
    %c0_18 = arith.constant 0 : index
    %30 = vector.load %arg6[%c0_17, %c0_18] : memref<8x2xf32, #tpu.memory_space<vmem>>, vector<8x2xf32>
    tpu.vector_store %arg6[%c0_17, %c0_18], %29 {strides = array<i32>} : memref<8x2xf32, #tpu.memory_space<vmem>>, vector<8x2xf32>,
    return
  }
  func.func @transform_0(%arg0: i32) -> (i32, i32) {
    %c0_i32 = arith.constant 0 : i32
    %c0_i32_0 = arith.constant 0 : i32
    return %arg0, %c0_i32 : i32, i32
  }
  func.func @transform_1(%arg0: i32) -> (i32, i32) {
    %c0_i32 = arith.constant 0 : i32
    %c0_i32_0 = arith.constant 0 : i32
    %c0_i32_1 = arith.constant 0 : i32
    return %c0_i32, %c0_i32_0 : i32, i32
  }
  func.func @transform_2(%arg0: i32) -> (i32, i32) {
    %c0_i32 = arith.constant 0 : i32
    %c0_i32_0 = arith.constant 0 : i32
    %c0_i32_1 = arith.constant 0 : i32
    return %c0_i32, %c0_i32_0 : i32, i32
  }
  func.func @transform_3(%arg0: i32) -> (i32, i32) {
    %c0_i32 = arith.constant 0 : i32
    %c0_i32_0 = arith.constant 0 : i32
    %c0_i32_1 = arith.constant 0 : i32
    return %c0_i32, %c0_i32_0 : i32, i32
  }
  func.func @transform_4(%arg0: i32) -> (i32, i32) {
    %c0_i32 = arith.constant 0 : i32
    %c0_i32_0 = arith.constant 0 : i32
    %c0_i32_1 = arith.constant 0 : i32
    return %c0_i32, %c0_i32_0 : i32, i32
  }
  func.func @transform_5(%arg0: i32) -> (i32, i32) {
    %c0_i32 = arith.constant 0 : i32
    %c0_i32_0 = arith.constant 0 : i32
    return %arg0, %c0_i32 : i32, i32
  }
}

</mosaic_0001>

<llo_original>
// kernel: discriminator_forward.1
$region0: #{discriminator_forward.1}
  #allocation0 [shape = 'u32[]', space=smem, size = 0x4, offset = 0x4, fixed_abs, tag = 'smem constant byte address 0x4 - core index']
  #allocation1 [shape = 'u32[144,128]{1,0:T(1,128)}', space=vmem, size = 0x12000, scoped, tag = 'internal scratch']
  %s0 = inlined_call_operand.vmem [shape: bf16[8,32], index: 0, kind: input, shape index: {}]
  %s1 = inlined_call_operand.vmem [shape: bf16[32,64], index: 1, kind: input, shape index: {}]
  %s2 = inlined_call_operand.vmem [shape: f32[1,64], index: 2, kind: input, shape index: {}]
  %s3 = inlined_call_operand.vmem [shape: f32[64,2], index: 3, kind: input, shape index: {}]
  %s4 = inlined_call_operand.vmem [shape: f32[1,2], index: 4, kind: input, shape index: {}]
  %s5 = inlined_call_operand.vmem [shape: f32[8,2], index: 5, kind: output, shape index: {}]
  %s6 = sld [smem:[#allocation0]]
  $region30: #{discriminator_forward.1} parent=0
    _
  %s8 = ssub.s32 1, %s6
  %s9 = scalar_select 0, %s8, %s6
  // Predicated region
  $region2: #{discriminator_forward.1} parent=0 // pred_check
    _
  $region3: #{discriminator_forward.1} parent=0 // pred_check_branch
    %11 = sbr.rel (0) target = $region5
  $region4: #{discriminator_forward.1} parent=0 // pred_region
    _
  $region5: #{discriminator_forward.1} parent=0 // pred_fallthru
    _
  // Predicated region
  $region6: #{discriminator_forward.1} parent=0 // pred_check
    _
  $region7: #{discriminator_forward.1} parent=0 // pred_check_branch
    %13 = sbr.rel (0) target = $region9
  $region8: #{discriminator_forward.1} parent=0 // pred_region
    _
  $region9: #{discriminator_forward.1} parent=0 // pred_fallthru
    _
  // Predicated region
  $region10: #{discriminator_forward.1} parent=0 // pred_check
    _
  $region11: #{discriminator_forward.1} parent=0 // pred_check_branch
    %15 = sbr.rel (0) target = $region13
  $region12: #{discriminator_forward.1} parent=0 // pred_region
    _
  $region13: #{discriminator_forward.1} parent=0 // pred_fallthru
    _
  // Predicated region
  $region14: #{discriminator_forward.1} parent=0 // pred_check
    _
  $region15: #{discriminator_forward.1} parent=0 // pred_check_branch
    %17 = sbr.rel (0) target = $region17
  $region16: #{discriminator_forward.1} parent=0 // pred_region
    _
  $region17: #{discriminator_forward.1} parent=0 // pred_fallthru
    _
  // Predicated region
  $region18: #{discriminator_forward.1} parent=0 // pred_check
    _
  $region19: #{discriminator_forward.1} parent=0 // pred_check_branch
    %19 = sbr.rel (0) target = $region21
  $region20: #{discriminator_forward.1} parent=0 // pred_region
    _
  $region21: #{discriminator_forward.1} parent=0 // pred_fallthru
    _
  %v21 = vld [vmem:[%s0] sm:$0xf]
  %v22 = vld [vmem:[%s1] sm:$0xf]
  %v23 = vld [vmem:[%s1 + $0x4] sm:$0xf]
  %v24 = vld [vmem:[%s1 + $0x8] sm:$0xf]
  %v25 = vld [vmem:[%s1 + $0xc] sm:$0xf]
  %v26 = vld [vmem:[%s2] sm:$0x1]
  %v28 = vlaneseq
  %v29 = vshrl.u32 %v28, 7
  %v30 = vsub.s32 0, %v29
  %v31 = vrot.slane %v26, %v30
  %v37 = vunpack.c.l.b16 %v22
  %v38 = vunpack.c.l.b16 %v23
  %v39 = vunpack.c.l.b16 %v24
  %v40 = vunpack.c.l.b16 %v25
  %v41 = vpack.c.b16 %v38, %v37
  %v42 = vpack.c.b16 %v40, %v39
  %vm45 = vcmask 261120
  %v47 = vsel %vm45, %v21, 0
  %49 = vmatprep.subr.bf16.mxu0 0
  %50 = vmatpush1.bf16.msra.mxu0 0
  %51 = vmatprep.subr.bf16.mxu0 0
  %52 = vmatpush1.bf16.msra.mxu0 0
  %53 = vmatprep.subr.bf16.mxu0 0
  %54 = vmatpush1.bf16.msra.mxu0 0
  %55 = vmatprep.subr.bf16.mxu0 0
  %56 = vmatpush1.bf16.msra.mxu0 0
  %57 = vmatprep.subr.bf16.mxu0 0
  %58 = vmatpush1.bf16.msra.mxu0 0
  %59 = vmatprep.subr.bf16.mxu0 0
  %60 = vmatpush1.bf16.msra.mxu0 0
  %61 = vmatprep.subr.bf16.mxu0 0
  %62 = vmatpush1.bf16.msra.mxu0 %v42
  %63 = vmatprep.subr.bf16.mxu0 0
  %64 = vmatpush1.bf16.msra.mxu0 %v41
  %65 = vmatprep.subr.bf16.mxu0 0
  %66 = vmatpush2.bf16.msra.mxu0 0
  %67 = vmatprep.subr.bf16.mxu0 0
  %68 = vmatpush2.bf16.msra.mxu0 0
  %69 = vmatprep.subr.bf16.mxu0 0
  %70 = vmatpush2.bf16.msra.mxu0 0
  %71 = vmatprep.subr.bf16.mxu0 0
  %72 = vmatpush2.bf16.msra.mxu0 0
  %73 = vmatprep.subr.bf16.mxu0 0
  %74 = vmatpush2.bf16.msra.mxu0 0
  %75 = vmatprep.subr.bf16.mxu0 0
  %76 = vmatpush2.bf16.msra.mxu0 0
  %77 = vmatprep.subr.bf16.mxu0 0
  %78 = vmatpush2.bf16.msra.mxu0 0
  %79 = vmatprep.subr.bf16.mxu0 0
  %80 = vmatpush2.bf16.msra.mxu0 0
  %81 = vmatprep.mubr.bf16.mxu0 0
  %82 = vmatmul.mubr.bf16.gmra.mxu0 %v47
  %v83 = vpop.f32.mrf.mxu0
  %v84 = vadd.f32 %v31, %v83
  %v85 = vpop.f32.mrf.mxu0
  %v86 = vpop.f32.mrf.mxu0
  %v87 = vpop.f32.mrf.mxu0
  %88 = vdwg.mxu0
  %vm89 = vcmp.ge.f32.partialorder %v84, 0.0
  %v90 = vmul.f32 %v84, 0.2
  %v91 = vsel %vm89, %v84, %v90
  %v92 = vld [vmem:[%s3] sm:$0xff]
  %v93 = vld [vmem:[%s3 + $0x8] sm:$0xff]
  %v94 = vld [vmem:[%s3 + $0x10] sm:$0xff]
  %v95 = vld [vmem:[%s3 + $0x18] sm:$0xff]
  %v96 = vld [vmem:[%s3 + $0x20] sm:$0xff]
  %v97 = vld [vmem:[%s3 + $0x28] sm:$0xff]
  %v98 = vld [vmem:[%s3 + $0x30] sm:$0xff]
  %v99 = vld [vmem:[%s3 + $0x38] sm:$0xff]
  %v100 = vld [vmem:[%s4] sm:$0x1]
  %v102 = vlaneseq
  %v103 = vshrl.u32 %v102, 7
  %v104 = vsub.s32 0, %v103
  %v105 = vrot.slane %v100, %v104
  %vm107 = vcmask 523264
  %v109 = vsel %vm107, %v91, 0
  %111 = vmatprep.subr.mxu0 0.0
  %112 = vmatpush1.msra.mxu0 0.0
  %113 = vmatprep.subr.mxu0 0.0
  %114 = vmatpush1.msra.mxu0 0.0
  %115 = vmatprep.subr.mxu0 0.0
  %116 = vmatpush1.msra.mxu0 0.0
  %117 = vmatprep.subr.mxu0 0.0
  %118 = vmatpush1.msra.mxu0 0.0
  %119 = vmatprep.subr.mxu0 0.0
  %120 = vmatpush1.msra.mxu0 0.0
  %121 = vmatprep.subr.mxu0 0.0
  %122 = vmatpush1.msra.mxu0 0.0
  %123 = vmatprep.subr.mxu0 0.0
  %124 = vmatpush1.msra.mxu0 0.0
  %125 = vmatprep.subr.mxu0 0.0
  %126 = vmatpush1.msra.mxu0 0.0
  %127 = vmatprep.subr.mxu0 0.0
  %128 = vmatpush1.msra.mxu0 %v99
  %129 = vmatprep.subr.mxu0 0.0
  %130 = vmatpush1.msra.mxu0 %v98
  %131 = vmatprep.subr.mxu0 0.0
  %132 = vmatpush1.msra.mxu0 %v97
  %133 = vmatprep.subr.mxu0 0.0
  %134 = vmatpush1.msra.mxu0 %v96
  %135 = vmatprep.subr.mxu0 0.0
  %136 = vmatpush1.msra.mxu0 %v95
  %137 = vmatprep.subr.mxu0 0.0
  %138 = vmatpush1.msra.mxu0 %v94
  %139 = vmatprep.subr.mxu0 0.0
  %140 = vmatpush1.msra.mxu0 %v93
  %141 = vmatprep.subr.mxu0 0.0
  %142 = vmatpush1.msra.mxu0 %v92
  %143 = vmatprep.subr.mxu0 0.0
  %144 = vmatpush2.msra.mxu0 0.0
  %145 = vmatprep.subr.mxu0 0.0
  %146 = vmatpush2.msra.mxu0 0.0
  %147 = vmatprep.subr.mxu0 0.0
  %148 = vmatpush2.msra.mxu0 0.0
  %149 = vmatprep.subr.mxu0 0.0
  %150 = vmatpush2.msra.mxu0 0.0
  %151 = vmatprep.subr.mxu0 0.0
  %152 = vmatpush2.msra.mxu0 0.0
  %153 = vmatprep.subr.mxu0 0.0
  %154 = vmatpush2.msra.mxu0 0.0
  %155 = vmatprep.subr.mxu0 0.0
  %156 = vmatpush2.msra.mxu0 0.0
  %157 = vmatprep.subr.mxu0 0.0
  %158 = vmatpush2.msra.mxu0 0.0
  %159 = vmatprep.subr.mxu0 0.0
  %160 = vmatpush2.msra.mxu0 0.0
  %161 = vmatprep.subr.mxu0 0.0
  %162 = vmatpush2.msra.mxu0 0.0
  %163 = vmatprep.subr.mxu0 0.0
  %164 = vmatpush2.msra.mxu0 0.0
  %165 = vmatprep.subr.mxu0 0.0
  %166 = vmatpush2.msra.mxu0 0.0
  %167 = vmatprep.subr.mxu0 0.0
  %168 = vmatpush2.msra.mxu0 0.0
  %169 = vmatprep.subr.mxu0 0.0
  %170 = vmatpush2.msra.mxu0 0.0
  %171 = vmatprep.subr.mxu0 0.0
  %172 = vmatpush2.msra.mxu0 0.0
  %173 = vmatprep.subr.mxu0 0.0
  %174 = vmatpush2.msra.mxu0 0.0
  %175 = vmatprep.mubr.f32.mxu0 0.0
  %176 = vmatmul.mubr.f32.gmra.mxu0 %v109
  %v177 = vpop.f32.mrf.mxu0
  %v178 = vadd.f32 %v105, %v177
  %v179 = vpop.f32.mrf.mxu0
  %180 = vdwg.mxu0
  %vm181 = vcmp.ge.f32.partialorder %v178, 0.0
  %v182 = vsub.f32 0.0, %v178
  %v183 = vsel %vm181, %v182, %v178
  %v184 = vmul.f32 %v183, 1.442695
  %v185 = vpow.pop %v184
  %v186 = vadd.f32 %v185, 1.0
  %v187 = vrcp.pop %v186
  %v188 = vmul.f32 1.0, %v187
  %v189 = vmul.f32 %v185, %v187
  %v190 = vsel %vm181, %v188, %v189
  %vm191 = vcmask 15360
  %192 = vst.msk [vmem:[%s5] sm:$0xff] %vm191, %v190
  // Predicated region
  $region22: #{discriminator_forward.1} parent=0 // pred_check
    _
  $region23: #{discriminator_forward.1} parent=0 // pred_check_branch
    %194 = sbr.rel (0) target = $region25
  $region24: #{discriminator_forward.1} parent=0 // pred_region
    _
  $region25: #{discriminator_forward.1} parent=0 // pred_fallthru
    _
  // Predicated region
  $region26: #{discriminator_forward.1} parent=0 // pred_check
    _
  $region27: #{discriminator_forward.1} parent=0 // pred_check_branch
    %196 = sbr.rel (0) target = $region29
  $region28: #{discriminator_forward.1} parent=0 // pred_region
    _
  $region29: #{discriminator_forward.1} parent=0 // pred_fallthru
    _

</llo_original>
